<compile_context>
chip_gen: v5e
topology: v5e:2x2
jax: 0.10.0
libtpu: 0.0.40
codegen_flags: <defaults>
</compile_context>

<pallas_src>
import jax
import jax.numpy as jnp
from jax import lax
from jax.experimental import pallas as pl
from jax.experimental.pallas import tpu as pltpu

# Shapes from the PyTorch module: input_size=2, hidden=4, out_features=19.
B, T, I, H, OUT = 2, 8, 2, 4, 19
BP = 8            # batch padded to one full sublane group
G4 = 4 * H        # 16: one direction's gate width
G8 = 8 * H        # 32: both directions' gate width

# Static offsets inside the (8, 128) parameter slab (all regions disjoint).
_B_ROW = I        # row  I,     cols 0:32   -> fused biases (fwd|bwd), gate-scaled
_WHH_COL = G8     # rows 0:H,   cols 32:48  -> Whh_f^T, gate-scaled
_FCW_COL = 64     # rows 0:2H,  cols 64:83  -> [fc_w[:, :H].T ; fc_w[:, H:].T]
_FCB_COL = 96     # row  7,     cols 96:115 -> fc bias
_FCB_ROW = 7


def lstm_kernel(x_ref, slab_ref, out_ref):
    # x_ref:    (T*BP, I) time-major, batch padded to 8 sublanes with zero rows.
    # slab_ref: (8, 128) packed parameters (one vreg, one DMA).
    slab = slab_ref[...]
    xr = jnp.maximum(x_ref[...], 0.0)                       # ReLU once, whole block

    wih_all = slab[0:I, 0:G8]                               # (I, 8H) fwd|bwd, scaled
    b_all = slab[_B_ROW:_B_ROW + 1, 0:G8]                   # (1, 8H) fused biases
    whh = slab[0:H, _WHH_COL:_WHH_COL + G4]                 # (H, 4H) fwd Whh^T
    fcw = slab[0:2 * H, _FCW_COL:_FCW_COL + OUT]            # (2H, OUT)
    fcb = slab[_FCB_ROW:_FCB_ROW + 1, _FCB_COL:_FCB_COL + OUT]  # (1, OUT)

    # Hoisted input projection for BOTH directions + fused bias: one matmul
    # covering all T steps, done once outside the recurrence.
    gx = jnp.dot(xr, wih_all, preferred_element_type=jnp.float32) + b_all  # (T*BP, 8H)

    # Hoist the per-row Whh broadcasts (JAX does not CSE broadcast_in_dim).
    w_rows = [jnp.broadcast_to(whh[k:k + 1, :], (BP, G4)) for k in range(H)]

    h = None
    c = None
    # T is tiny and static: fully unrolled so every slice is static and the
    # scheduler sees the whole dependency chain.
    for t in range(T):
        g_t = gx[t * BP:(t + 1) * BP, 0:G4]                 # sublane-aligned (8, 4H)
        if t == 0:
            gates = g_t                                     # h == c == 0 at t == 0
        else:
            # Recurrent term on the VPU: 4 lane-broadcast FMAs, no MXU round-trip.
            rec = ((h[:, 0:1] * w_rows[0] + h[:, 1:2] * w_rows[1])
                   + (h[:, 2:3] * w_rows[2] + h[:, 3:4] * w_rows[3]))
            gates = g_t + rec
        # Single whole-vreg transcendental: i/f/o pre-activations were
        # pre-scaled by 0.5 in the wrapper, so sigmoid == 0.5*tanh + 0.5.
        th = jnp.tanh(gates)
        i_g = 0.5 * th[:, 0:H] + 0.5
        f_g = 0.5 * th[:, H:2 * H] + 0.5
        g_g = th[:, 2 * H:3 * H]
        o_g = 0.5 * th[:, 3 * H:4 * H] + 0.5
        if t == 0:
            c = i_g * g_g                                   # f*c0 == 0
        else:
            c = f_g * c + i_g * g_g
        h = o_g * jnp.tanh(c)
    # h == out[:, -1, :H] (final forward hidden state), padded rows ignored.

    # Backward direction: out[:, -1, H:] is the reverse direction after its
    # FIRST step, i.e. one cell application to x[T-1] from zero state; the
    # h0 @ Whh_b term is exactly zero and is dropped, and its input projection
    # was already produced by the hoisted matmul (columns 4H:8H).
    # TODO(synk): if full-sequence bidirectional outputs or nonzero initial
    # states are ever needed, the reverse direction must run a full scan.
    gates_b = gx[(T - 1) * BP:T * BP, G4:G8]                # (8, 4H), bias included
    th_b = jnp.tanh(gates_b)
    c_b = (0.5 * th_b[:, 0:H] + 0.5) * th_b[:, 2 * H:3 * H]
    h_b = (0.5 * th_b[:, 3 * H:4 * H] + 0.5) * jnp.tanh(c_b)

    # fc(out[:, -1, :]) == concat([h, h_b], -1) @ fc_w.T + fc_b, as one dot.
    hcat = jnp.concatenate([h, h_b], axis=1)                # (8, 2H)
    out = jnp.dot(hcat, fcw, preferred_element_type=jnp.float32) + fcb
    out_ref[...] = out[:B, :]


def _pack_slab(params):
    """Pack every weight/bias into one (8, 128) f32 slab (one DMA)."""
    (wih_f, whh_f, b_ih_f, b_hh_f,
     wih_b, whh_b, b_ih_b, b_hh_b, fc_w, fc_b) = params
    del whh_b  # its contribution to out[:, -1, H:] is exactly zero

    # Pre-scale i/f/o gate columns by 0.5 so sigmoid(z) = 0.5*tanh(z/2)+0.5
    # costs a single in-kernel tanh per step (g column unscaled).
    scale = jnp.concatenate([
        jnp.full((H,), 0.5, jnp.float32), jnp.full((H,), 0.5, jnp.float32),
        jnp.ones((H,), jnp.float32), jnp.full((H,), 0.5, jnp.float32)])

    wih_all = jnp.concatenate([wih_f.T * scale, wih_b.T * scale], axis=1)     # (I, 8H)
    b_all = jnp.concatenate([(b_ih_f + b_hh_f) * scale,
                             (b_ih_b + b_hh_b) * scale])                      # (8H,)
    whh_t = whh_f.T * scale                                                   # (H, 4H)
    fcw = jnp.concatenate([fc_w[:, :H].T, fc_w[:, H:].T], axis=0)             # (2H, OUT)

    slab = jnp.zeros((8, 128), jnp.float32)
    slab = slab.at[0:I, 0:G8].set(wih_all.astype(jnp.float32))
    slab = slab.at[_B_ROW, 0:G8].set(b_all.astype(jnp.float32))
    slab = slab.at[0:H, _WHH_COL:_WHH_COL + G4].set(whh_t.astype(jnp.float32))
    slab = slab.at[0:2 * H, _FCW_COL:_FCW_COL + OUT].set(fcw.astype(jnp.float32))
    slab = slab.at[_FCB_ROW, _FCB_COL:_FCB_COL + OUT].set(fc_b.astype(jnp.float32))
    return slab


@jax.jit
def lstm_forward(x, params):
    """x: (B, T, I) float32 batch_first (like PyTorch). Returns (B, OUT)."""
    # Layout plumbing done once outside the kernel:
    #  - time-major + batch padded to 8 sublanes + flatten -> aligned per-step
    #    row groups and a single hoisted projection matmul
    #  - all weights pre-transposed / gate-scaled / packed into one slab
    x_t = jnp.transpose(x, (1, 0, 2)).astype(jnp.float32)    # (T, B, I)
    x_p = jnp.pad(x_t, ((0, 0), (0, BP - B), (0, 0)))        # (T, BP, I), zero rows
    x_flat = x_p.reshape(T * BP, I)

    slab = _pack_slab(params)

    vmem = pl.BlockSpec(memory_space=pltpu.MemorySpace.VMEM)
    return pl.pallas_call(
        lstm_kernel,
        out_shape=jax.ShapeDtypeStruct((B, OUT), jnp.float32),
        in_specs=[vmem, vmem],
        out_specs=vmem,
    )(x_flat, slab)


def make_params(key):
    """PyTorch-layout params, uniform(-1/sqrt(H), 1/sqrt(H)) style init."""
    bound = 1.0 / jnp.sqrt(jnp.float32(H))
    ks = jax.random.split(key, 12)
    u = lambda k, shape, b: jax.random.uniform(k, shape, jnp.float32, -b, b)

    wih_f = u(ks[0], (4 * H, I), bound)
    whh_f = u(ks[1], (4 * H, H), bound)
    b_ih_f = u(ks[2], (4 * H,), bound)
    b_hh_f = u(ks[3], (4 * H,), bound)
    wih_b = u(ks[4], (4 * H, I), bound)
    whh_b = u(ks[5], (4 * H, H), bound)
    b_ih_b = u(ks[6], (4 * H,), bound)
    b_hh_b = u(ks[7], (4 * H,), bound)

    fc_bound = 1.0 / jnp.sqrt(jnp.float32(2 * H))
    fc_w = u(ks[8], (OUT, 2 * H), fc_bound)
    fc_b = u(ks[9], (OUT,), fc_bound)
    return (wih_f, whh_f, b_ih_f, b_hh_f,
            wih_b, whh_b, b_ih_b, b_hh_b, fc_w, fc_b)


def reference(x, params):
    """Pure-JAX reference matching PyTorch bidirectional LSTM + fc semantics."""
    (wih_f, whh_f, b_ih_f, b_hh_f,
     wih_b, whh_b, b_ih_b, b_hh_b, fc_w, fc_b) = params
    xr = jnp.maximum(x, 0.0)
    xt = jnp.transpose(xr, (1, 0, 2))            # (T, B, I)
    b_f = b_ih_f + b_hh_f
    b_b = b_ih_b + b_hh_b

    def cell(carry, x_t, wih, whh, b):
        h, c = carry
        gates = x_t @ wih.T + h @ whh.T + b
        i_g = jax.nn.sigmoid(gates[:, :H])
        f_g = jax.nn.sigmoid(gates[:, H:2 * H])
        g_g = jnp.tanh(gates[:, 2 * H:3 * H])
        o_g = jax.nn.sigmoid(gates[:, 3 * H:])
        c = f_g * c + i_g * g_g
        h = o_g * jnp.tanh(c)
        return (h, c), h

    h0 = jnp.zeros((B, H), jnp.float32)
    c0 = jnp.zeros((B, H), jnp.float32)
    (_, _), hs_f = lax.scan(lambda ca, x_: cell(ca, x_, wih_f, whh_f, b_f), (h0, c0), xt)
    (_, _), hs_b = lax.scan(lambda ca, x_: cell(ca, x_, wih_b, whh_b, b_b), (h0, c0), xt[::-1])
    hs_b = hs_b[::-1]
    last = jnp.concatenate([hs_f[-1], hs_b[-1]], axis=-1)   # out[:, -1, :]
    return last @ fc_w.T + fc_b


if __name__ == "__main__":
    key = jax.random.PRNGKey(0)
    k_x, k_p = jax.random.split(key)
    x = jax.random.normal(k_x, (B, T, I), jnp.float32)
    params = make_params(k_p)

    out = jax.block_until_ready(lstm_forward(x, params))

    ref = reference(x, params)
    assert out.shape == (B, OUT)
    assert jnp.allclose(out, ref, atol=1e-4, rtol=1e-4), (out, ref)
    print("KERNEL_OK")
</pallas_src>

<mosaic_0001>
module attributes {stable_mosaic.version = 11 : i64} {
  func.func @lstm_kernel(%arg0: memref<64x2xf32, #tpu.memory_space<vmem>>, %arg1: memref<8x128xf32, #tpu.memory_space<vmem>>, %arg2: memref<2x19xf32, #tpu.memory_space<vmem>>) attributes {dimension_semantics = [], scalar_prefetch = 0 : i64, scratch_operands = 0 : i64, tpu.core_type = #tpu.core_type<tc>} {
    %c0 = arith.constant 0 : index
    %c0_0 = arith.constant 0 : index
    %0 = vector.load %arg1[%c0, %c0_0] : memref<8x128xf32, #tpu.memory_space<vmem>>, vector<8x128xf32>
    %c0_1 = arith.constant 0 : index
    %c0_2 = arith.constant 0 : index
    %1 = vector.load %arg0[%c0_1, %c0_2] : memref<64x2xf32, #tpu.memory_space<vmem>>, vector<64x2xf32>
    %cst = arith.constant 0.000000e+00 : f32
    %2 = vector.broadcast %cst : f32 to vector<64x2xf32>
    %3 = arith.maximumf %1, %2 : vector<64x2xf32>
    %4 = vector.extract_strided_slice %0 {offsets = [0, 0], sizes = [2, 32], strides = [1, 1]} : vector<8x128xf32> to vector<2x32xf32>
    %5 = vector.extract_strided_slice %0 {offsets = [2, 0], sizes = [1, 32], strides = [1, 1]} : vector<8x128xf32> to vector<1x32xf32>
    %6 = vector.extract_strided_slice %0 {offsets = [0, 32], sizes = [4, 16], strides = [1, 1]} : vector<8x128xf32> to vector<4x16xf32>
    %7 = vector.extract_strided_slice %0 {offsets = [0, 64], sizes = [8, 19], strides = [1, 1]} : vector<8x128xf32> to vector<8x19xf32>
    %8 = vector.extract_strided_slice %0 {offsets = [7, 96], sizes = [1, 19], strides = [1, 1]} : vector<8x128xf32> to vector<1x19xf32>
    %cst_3 = arith.constant dense<0.000000e+00> : vector<64x32xf32>
    %9 = tpu.matmul %3, %4, %cst_3 {dimension_numbers = #tpu.dot_dimension_numbers<[1], [0], [0], [1], [0, 0, 1, 1], [], []>} : vector<64x2xf32>, vector<2x32xf32>, vector<64x32xf32> -> vector<64x32xf32>
    %10 = vector.broadcast %5 : vector<1x32xf32> to vector<64x32xf32>
    %11 = arith.addf %9, %10 : vector<64x32xf32>
    %12 = vector.extract_strided_slice %6 {offsets = [0, 0], sizes = [1, 16], strides = [1, 1]} : vector<4x16xf32> to vector<1x16xf32>
    %13 = vector.shape_cast %12 : vector<1x16xf32> to vector<1x16xf32>
    %14 = vector.broadcast %13 : vector<1x16xf32> to vector<8x16xf32>
    %15 = vector.extract_strided_slice %6 {offsets = [1, 0], sizes = [1, 16], strides = [1, 1]} : vector<4x16xf32> to vector<1x16xf32>
    %16 = vector.shape_cast %15 : vector<1x16xf32> to vector<1x16xf32>
    %17 = vector.broadcast %16 : vector<1x16xf32> to vector<8x16xf32>
    %18 = vector.extract_strided_slice %6 {offsets = [2, 0], sizes = [1, 16], strides = [1, 1]} : vector<4x16xf32> to vector<1x16xf32>
    %19 = vector.shape_cast %18 : vector<1x16xf32> to vector<1x16xf32>
    %20 = vector.broadcast %19 : vector<1x16xf32> to vector<8x16xf32>
    %21 = vector.extract_strided_slice %6 {offsets = [3, 0], sizes = [1, 16], strides = [1, 1]} : vector<4x16xf32> to vector<1x16xf32>
    %22 = vector.shape_cast %21 : vector<1x16xf32> to vector<1x16xf32>
    %23 = vector.broadcast %22 : vector<1x16xf32> to vector<8x16xf32>
    %24 = vector.extract_strided_slice %11 {offsets = [0, 0], sizes = [8, 16], strides = [1, 1]} : vector<64x32xf32> to vector<8x16xf32>
    %25 = math.tanh %24 : vector<8x16xf32>
    %26 = vector.extract_strided_slice %25 {offsets = [0, 0], sizes = [8, 4], strides = [1, 1]} : vector<8x16xf32> to vector<8x4xf32>
    %cst_4 = arith.constant 5.000000e-01 : f32
    %27 = vector.broadcast %cst_4 : f32 to vector<8x4xf32>
    %28 = arith.mulf %27, %26 : vector<8x4xf32>
    %cst_5 = arith.constant 5.000000e-01 : f32
    %29 = vector.broadcast %cst_5 : f32 to vector<8x4xf32>
    %30 = arith.addf %28, %29 : vector<8x4xf32>
    %31 = vector.extract_strided_slice %25 {offsets = [0, 8], sizes = [8, 4], strides = [1, 1]} : vector<8x16xf32> to vector<8x4xf32>
    %32 = vector.extract_strided_slice %25 {offsets = [0, 12], sizes = [8, 4], strides = [1, 1]} : vector<8x16xf32> to vector<8x4xf32>
    %cst_6 = arith.constant 5.000000e-01 : f32
    %33 = vector.broadcast %cst_6 : f32 to vector<8x4xf32>
    %34 = arith.mulf %33, %32 : vector<8x4xf32>
    %cst_7 = arith.constant 5.000000e-01 : f32
    %35 = vector.broadcast %cst_7 : f32 to vector<8x4xf32>
    %36 = arith.addf %34, %35 : vector<8x4xf32>
    %37 = arith.mulf %30, %31 : vector<8x4xf32>
    %38 = math.tanh %37 : vector<8x4xf32>
    %39 = arith.mulf %36, %38 : vector<8x4xf32>
    %40 = vector.extract_strided_slice %11 {offsets = [8, 0], sizes = [8, 16], strides = [1, 1]} : vector<64x32xf32> to vector<8x16xf32>
    %41 = vector.extract_strided_slice %39 {offsets = [0, 0], sizes = [8, 1], strides = [1, 1]} : vector<8x4xf32> to vector<8x1xf32>
    %42 = vector.broadcast %41 : vector<8x1xf32> to vector<8x16xf32>
    %43 = arith.mulf %42, %14 : vector<8x16xf32>
    %44 = vector.extract_strided_slice %39 {offsets = [0, 1], sizes = [8, 1], strides = [1, 1]} : vector<8x4xf32> to vector<8x1xf32>
    %45 = vector.broadcast %44 : vector<8x1xf32> to vector<8x16xf32>
    %46 = arith.mulf %45, %17 : vector<8x16xf32>
    %47 = arith.addf %43, %46 : vector<8x16xf32>
    %48 = vector.extract_strided_slice %39 {offsets = [0, 2], sizes = [8, 1], strides = [1, 1]} : vector<8x4xf32> to vector<8x1xf32>
    %49 = vector.broadcast %48 : vector<8x1xf32> to vector<8x16xf32>
    %50 = arith.mulf %49, %20 : vector<8x16xf32>
    %51 = vector.extract_strided_slice %39 {offsets = [0, 3], sizes = [8, 1], strides = [1, 1]} : vector<8x4xf32> to vector<8x1xf32>
    %52 = vector.broadcast %51 : vector<8x1xf32> to vector<8x16xf32>
    %53 = arith.mulf %52, %23 : vector<8x16xf32>
    %54 = arith.addf %50, %53 : vector<8x16xf32>
    %55 = arith.addf %47, %54 : vector<8x16xf32>
    %56 = arith.addf %40, %55 : vector<8x16xf32>
    %57 = math.tanh %56 : vector<8x16xf32>
    %58 = vector.extract_strided_slice %57 {offsets = [0, 0], sizes = [8, 4], strides = [1, 1]} : vector<8x16xf32> to vector<8x4xf32>
    %cst_8 = arith.constant 5.000000e-01 : f32
    %59 = vector.broadcast %cst_8 : f32 to vector<8x4xf32>
    %60 = arith.mulf %59, %58 : vector<8x4xf32>
    %cst_9 = arith.constant 5.000000e-01 : f32
    %61 = vector.broadcast %cst_9 : f32 to vector<8x4xf32>
    %62 = arith.addf %60, %61 : vector<8x4xf32>
    %63 = vector.extract_strided_slice %57 {offsets = [0, 4], sizes = [8, 4], strides = [1, 1]} : vector<8x16xf32> to vector<8x4xf32>
    %cst_10 = arith.constant 5.000000e-01 : f32
    %64 = vector.broadcast %cst_10 : f32 to vector<8x4xf32>
    %65 = arith.mulf %64, %63 : vector<8x4xf32>
    %cst_11 = arith.constant 5.000000e-01 : f32
    %66 = vector.broadcast %cst_11 : f32 to vector<8x4xf32>
    %67 = arith.addf %65, %66 : vector<8x4xf32>
    %68 = vector.extract_strided_slice %57 {offsets = [0, 8], sizes = [8, 4], strides = [1, 1]} : vector<8x16xf32> to vector<8x4xf32>
    %69 = vector.extract_strided_slice %57 {offsets = [0, 12], sizes = [8, 4], strides = [1, 1]} : vector<8x16xf32> to vector<8x4xf32>
    %cst_12 = arith.constant 5.000000e-01 : f32
    %70 = vector.broadcast %cst_12 : f32 to vector<8x4xf32>
    %71 = arith.mulf %70, %69 : vector<8x4xf32>
    %cst_13 = arith.constant 5.000000e-01 : f32
    %72 = vector.broadcast %cst_13 : f32 to vector<8x4xf32>
    %73 = arith.addf %71, %72 : vector<8x4xf32>
    %74 = arith.mulf %67, %37 : vector<8x4xf32>
    %75 = arith.mulf %62, %68 : vector<8x4xf32>
    %76 = arith.addf %74, %75 : vector<8x4xf32>
    %77 = math.tanh %76 : vector<8x4xf32>
    %78 = arith.mulf %73, %77 : vector<8x4xf32>
    %79 = vector.extract_strided_slice %11 {offsets = [16, 0], sizes = [8, 16], strides = [1, 1]} : vector<64x32xf32> to vector<8x16xf32>
    %80 = vector.extract_strided_slice %78 {offsets = [0, 0], sizes = [8, 1], strides = [1, 1]} : vector<8x4xf32> to vector<8x1xf32>
    %81 = vector.broadcast %80 : vector<8x1xf32> to vector<8x16xf32>
    %82 = arith.mulf %81, %14 : vector<8x16xf32>
    %83 = vector.extract_strided_slice %78 {offsets = [0, 1], sizes = [8, 1], strides = [1, 1]} : vector<8x4xf32> to vector<8x1xf32>
    %84 = vector.broadcast %83 : vector<8x1xf32> to vector<8x16xf32>
    %85 = arith.mulf %84, %17 : vector<8x16xf32>
    %86 = arith.addf %82, %85 : vector<8x16xf32>
    %87 = vector.extract_strided_slice %78 {offsets = [0, 2], sizes = [8, 1], strides = [1, 1]} : vector<8x4xf32> to vector<8x1xf32>
    %88 = vector.broadcast %87 : vector<8x1xf32> to vector<8x16xf32>
    %89 = arith.mulf %88, %20 : vector<8x16xf32>
    %90 = vector.extract_strided_slice %78 {offsets = [0, 3], sizes = [8, 1], strides = [1, 1]} : vector<8x4xf32> to vector<8x1xf32>
    %91 = vector.broadcast %90 : vector<8x1xf32> to vector<8x16xf32>
    %92 = arith.mulf %91, %23 : vector<8x16xf32>
    %93 = arith.addf %89, %92 : vector<8x16xf32>
    %94 = arith.addf %86, %93 : vector<8x16xf32>
    %95 = arith.addf %79, %94 : vector<8x16xf32>
    %96 = math.tanh %95 : vector<8x16xf32>
    %97 = vector.extract_strided_slice %96 {offsets = [0, 0], sizes = [8, 4], strides = [1, 1]} : vector<8x16xf32> to vector<8x4xf32>
    %cst_14 = arith.constant 5.000000e-01 : f32
    %98 = vector.broadcast %cst_14 : f32 to vector<8x4xf32>
    %99 = arith.mulf %98, %97 : vector<8x4xf32>
    %cst_15 = arith.constant 5.000000e-01 : f32
    %100 = vector.broadcast %cst_15 : f32 to vector<8x4xf32>
    %101 = arith.addf %99, %100 : vector<8x4xf32>
    %102 = vector.extract_strided_slice %96 {offsets = [0, 4], sizes = [8, 4], strides = [1, 1]} : vector<8x16xf32> to vector<8x4xf32>
    %cst_16 = arith.constant 5.000000e-01 : f32
    %103 = vector.broadcast %cst_16 : f32 to vector<8x4xf32>
    %104 = arith.mulf %103, %102 : vector<8x4xf32>
    %cst_17 = arith.constant 5.000000e-01 : f32
    %105 = vector.broadcast %cst_17 : f32 to vector<8x4xf32>
    %106 = arith.addf %104, %105 : vector<8x4xf32>
    %107 = vector.extract_strided_slice %96 {offsets = [0, 8], sizes = [8, 4], strides = [1, 1]} : vector<8x16xf32> to vector<8x4xf32>
    %108 = vector.extract_strided_slice %96 {offsets = [0, 12], sizes = [8, 4], strides = [1, 1]} : vector<8x16xf32> to vector<8x4xf32>
    %cst_18 = arith.constant 5.000000e-01 : f32
    %109 = vector.broadcast %cst_18 : f32 to vector<8x4xf32>
    %110 = arith.mulf %109, %108 : vector<8x4xf32>
    %cst_19 = arith.constant 5.000000e-01 : f32
    %111 = vector.broadcast %cst_19 : f32 to vector<8x4xf32>
    %112 = arith.addf %110, %111 : vector<8x4xf32>
    %113 = arith.mulf %106, %76 : vector<8x4xf32>
    %114 = arith.mulf %101, %107 : vector<8x4xf32>
    %115 = arith.addf %113, %114 : vector<8x4xf32>
    %116 = math.tanh %115 : vector<8x4xf32>
    %117 = arith.mulf %112, %116 : vector<8x4xf32>
    %118 = vector.extract_strided_slice %11 {offsets = [24, 0], sizes = [8, 16], strides = [1, 1]} : vector<64x32xf32> to vector<8x16xf32>
    %119 = vector.extract_strided_slice %117 {offsets = [0, 0], sizes = [8, 1], strides = [1, 1]} : vector<8x4xf32> to vector<8x1xf32>
    %120 = vector.broadcast %119 : vector<8x1xf32> to vector<8x16xf32>
    %121 = arith.mulf %120, %14 : vector<8x16xf32>
    %122 = vector.extract_strided_slice %117 {offsets = [0, 1], sizes = [8, 1], strides = [1, 1]} : vector<8x4xf32> to vector<8x1xf32>
    %123 = vector.broadcast %122 : vector<8x1xf32> to vector<8x16xf32>
    %124 = arith.mulf %123, %17 : vector<8x16xf32>
    %125 = arith.addf %121, %124 : vector<8x16xf32>
    %126 = vector.extract_strided_slice %117 {offsets = [0, 2], sizes = [8, 1], strides = [1, 1]} : vector<8x4xf32> to vector<8x1xf32>
    %127 = vector.broadcast %126 : vector<8x1xf32> to vector<8x16xf32>
    %128 = arith.mulf %127, %20 : vector<8x16xf32>
    %129 = vector.extract_strided_slice %117 {offsets = [0, 3], sizes = [8, 1], strides = [1, 1]} : vector<8x4xf32> to vector<8x1xf32>
    %130 = vector.broadcast %129 : vector<8x1xf32> to vector<8x16xf32>
    %131 = arith.mulf %130, %23 : vector<8x16xf32>
    %132 = arith.addf %128, %131 : vector<8x16xf32>
    %133 = arith.addf %125, %132 : vector<8x16xf32>
    %134 = arith.addf %118, %133 : vector<8x16xf32>
    %135 = math.tanh %134 : vector<8x16xf32>
    %136 = vector.extract_strided_slice %135 {offsets = [0, 0], sizes = [8, 4], strides = [1, 1]} : vector<8x16xf32> to vector<8x4xf32>
    %cst_20 = arith.constant 5.000000e-01 : f32
    %137 = vector.broadcast %cst_20 : f32 to vector<8x4xf32>
    %138 = arith.mulf %137, %136 : vector<8x4xf32>
    %cst_21 = arith.constant 5.000000e-01 : f32
    %139 = vector.broadcast %cst_21 : f32 to vector<8x4xf32>
    %140 = arith.addf %138, %139 : vector<8x4xf32>
    %141 = vector.extract_strided_slice %135 {offsets = [0, 4], sizes = [8, 4], strides = [1, 1]} : vector<8x16xf32> to vector<8x4xf32>
    %cst_22 = arith.constant 5.000000e-01 : f32
    %142 = vector.broadcast %cst_22 : f32 to vector<8x4xf32>
    %143 = arith.mulf %142, %141 : vector<8x4xf32>
    %cst_23 = arith.constant 5.000000e-01 : f32
    %144 = vector.broadcast %cst_23 : f32 to vector<8x4xf32>
    %145 = arith.addf %143, %144 : vector<8x4xf32>
    %146 = vector.extract_strided_slice %135 {offsets = [0, 8], sizes = [8, 4], strides = [1, 1]} : vector<8x16xf32> to vector<8x4xf32>
    %147 = vector.extract_strided_slice %135 {offsets = [0, 12], sizes = [8, 4], strides = [1, 1]} : vector<8x16xf32> to vector<8x4xf32>
    %cst_24 = arith.constant 5.000000e-01 : f32
    %148 = vector.broadcast %cst_24 : f32 to vector<8x4xf32>
    %149 = arith.mulf %148, %147 : vector<8x4xf32>
    %cst_25 = arith.constant 5.000000e-01 : f32
    %150 = vector.broadcast %cst_25 : f32 to vector<8x4xf32>
    %151 = arith.addf %149, %150 : vector<8x4xf32>
    %152 = arith.mulf %145, %115 : vector<8x4xf32>
    %153 = arith.mulf %140, %146 : vector<8x4xf32>
    %154 = arith.addf %152, %153 : vector<8x4xf32>
    %155 = math.tanh %154 : vector<8x4xf32>
    %156 = arith.mulf %151, %155 : vector<8x4xf32>
    %157 = vector.extract_strided_slice %11 {offsets = [32, 0], sizes = [8, 16], strides = [1, 1]} : vector<64x32xf32> to vector<8x16xf32>
    %158 = vector.extract_strided_slice %156 {offsets = [0, 0], sizes = [8, 1], strides = [1, 1]} : vector<8x4xf32> to vector<8x1xf32>
    %159 = vector.broadcast %158 : vector<8x1xf32> to vector<8x16xf32>
    %160 = arith.mulf %159, %14 : vector<8x16xf32>
    %161 = vector.extract_strided_slice %156 {offsets = [0, 1], sizes = [8, 1], strides = [1, 1]} : vector<8x4xf32> to vector<8x1xf32>
    %162 = vector.broadcast %161 : vector<8x1xf32> to vector<8x16xf32>
    %163 = arith.mulf %162, %17 : vector<8x16xf32>
    %164 = arith.addf %160, %163 : vector<8x16xf32>
    %165 = vector.extract_strided_slice %156 {offsets = [0, 2], sizes = [8, 1], strides = [1, 1]} : vector<8x4xf32> to vector<8x1xf32>
    %166 = vector.broadcast %165 : vector<8x1xf32> to vector<8x16xf32>
    %167 = arith.mulf %166, %20 : vector<8x16xf32>
    %168 = vector.extract_strided_slice %156 {offsets = [0, 3], sizes = [8, 1], strides = [1, 1]} : vector<8x4xf32> to vector<8x1xf32>
    %169 = vector.broadcast %168 : vector<8x1xf32> to vector<8x16xf32>
    %170 = arith.mulf %169, %23 : vector<8x16xf32>
    %171 = arith.addf %167, %170 : vector<8x16xf32>
    %172 = arith.addf %164, %171 : vector<8x16xf32>
    %173 = arith.addf %157, %172 : vector<8x16xf32>
    %174 = math.tanh %173 : vector<8x16xf32>
    %175 = vector.extract_strided_slice %174 {offsets = [0, 0], sizes = [8, 4], strides = [1, 1]} : vector<8x16xf32> to vector<8x4xf32>
    %cst_26 = arith.constant 5.000000e-01 : f32
    %176 = vector.broadcast %cst_26 : f32 to vector<8x4xf32>
    %177 = arith.mulf %176, %175 : vector<8x4xf32>
    %cst_27 = arith.constant 5.000000e-01 : f32
    %178 = vector.broadcast %cst_27 : f32 to vector<8x4xf32>
    %179 = arith.addf %177, %178 : vector<8x4xf32>
    %180 = vector.extract_strided_slice %174 {offsets = [0, 4], sizes = [8, 4], strides = [1, 1]} : vector<8x16xf32> to vector<8x4xf32>
    %cst_28 = arith.constant 5.000000e-01 : f32
    %181 = vector.broadcast %cst_28 : f32 to vector<8x4xf32>
    %182 = arith.mulf %181, %180 : vector<8x4xf32>
    %cst_29 = arith.constant 5.000000e-01 : f32
    %183 = vector.broadcast %cst_29 : f32 to vector<8x4xf32>
    %184 = arith.addf %182, %183 : vector<8x4xf32>
    %185 = vector.extract_strided_slice %174 {offsets = [0, 8], sizes = [8, 4], strides = [1, 1]} : vector<8x16xf32> to vector<8x4xf32>
    %186 = vector.extract_strided_slice %174 {offsets = [0, 12], sizes = [8, 4], strides = [1, 1]} : vector<8x16xf32> to vector<8x4xf32>
    %cst_30 = arith.constant 5.000000e-01 : f32
    %187 = vector.broadcast %cst_30 : f32 to vector<8x4xf32>
    %188 = arith.mulf %187, %186 : vector<8x4xf32>
    %cst_31 = arith.constant 5.000000e-01 : f32
    %189 = vector.broadcast %cst_31 : f32 to vector<8x4xf32>
    %190 = arith.addf %188, %189 : vector<8x4xf32>
    %191 = arith.mulf %184, %154 : vector<8x4xf32>
    %192 = arith.mulf %179, %185 : vector<8x4xf32>
    %193 = arith.addf %191, %192 : vector<8x4xf32>
    %194 = math.tanh %193 : vector<8x4xf32>
    %195 = arith.mulf %190, %194 : vector<8x4xf32>
    %196 = vector.extract_strided_slice %11 {offsets = [40, 0], sizes = [8, 16], strides = [1, 1]} : vector<64x32xf32> to vector<8x16xf32>
    %197 = vector.extract_strided_slice %195 {offsets = [0, 0], sizes = [8, 1], strides = [1, 1]} : vector<8x4xf32> to vector<8x1xf32>
    %198 = vector.broadcast %197 : vector<8x1xf32> to vector<8x16xf32>
    %199 = arith.mulf %198, %14 : vector<8x16xf32>
    %200 = vector.extract_strided_slice %195 {offsets = [0, 1], sizes = [8, 1], strides = [1, 1]} : vector<8x4xf32> to vector<8x1xf32>
    %201 = vector.broadcast %200 : vector<8x1xf32> to vector<8x16xf32>
    %202 = arith.mulf %201, %17 : vector<8x16xf32>
    %203 = arith.addf %199, %202 : vector<8x16xf32>
    %204 = vector.extract_strided_slice %195 {offsets = [0, 2], sizes = [8, 1], strides = [1, 1]} : vector<8x4xf32> to vector<8x1xf32>
    %205 = vector.broadcast %204 : vector<8x1xf32> to vector<8x16xf32>
    %206 = arith.mulf %205, %20 : vector<8x16xf32>
    %207 = vector.extract_strided_slice %195 {offsets = [0, 3], sizes = [8, 1], strides = [1, 1]} : vector<8x4xf32> to vector<8x1xf32>
    %208 = vector.broadcast %207 : vector<8x1xf32> to vector<8x16xf32>
    %209 = arith.mulf %208, %23 : vector<8x16xf32>
    %210 = arith.addf %206, %209 : vector<8x16xf32>
    %211 = arith.addf %203, %210 : vector<8x16xf32>
    %212 = arith.addf %196, %211 : vector<8x16xf32>
    %213 = math.tanh %212 : vector<8x16xf32>
    %214 = vector.extract_strided_slice %213 {offsets = [0, 0], sizes = [8, 4], strides = [1, 1]} : vector<8x16xf32> to vector<8x4xf32>
    %cst_32 = arith.constant 5.000000e-01 : f32
    %215 = vector.broadcast %cst_32 : f32 to vector<8x4xf32>
    %216 = arith.mulf %215, %214 : vector<8x4xf32>
    %cst_33 = arith.constant 5.000000e-01 : f32
    %217 = vector.broadcast %cst_33 : f32 to vector<8x4xf32>
    %218 = arith.addf %216, %217 : vector<8x4xf32>
    %219 = vector.extract_strided_slice %213 {offsets = [0, 4], sizes = [8, 4], strides = [1, 1]} : vector<8x16xf32> to vector<8x4xf32>
    %cst_34 = arith.constant 5.000000e-01 : f32
    %220 = vector.broadcast %cst_34 : f32 to vector<8x4xf32>
    %221 = arith.mulf %220, %219 : vector<8x4xf32>
    %cst_35 = arith.constant 5.000000e-01 : f32
    %222 = vector.broadcast %cst_35 : f32 to vector<8x4xf32>
    %223 = arith.addf %221, %222 : vector<8x4xf32>
    %224 = vector.extract_strided_slice %213 {offsets = [0, 8], sizes = [8, 4], strides = [1, 1]} : vector<8x16xf32> to vector<8x4xf32>
    %225 = vector.extract_strided_slice %213 {offsets = [0, 12], sizes = [8, 4], strides = [1, 1]} : vector<8x16xf32> to vector<8x4xf32>
    %cst_36 = arith.constant 5.000000e-01 : f32
    %226 = vector.broadcast %cst_36 : f32 to vector<8x4xf32>
    %227 = arith.mulf %226, %225 : vector<8x4xf32>
    %cst_37 = arith.constant 5.000000e-01 : f32
    %228 = vector.broadcast %cst_37 : f32 to vector<8x4xf32>
    %229 = arith.addf %227, %228 : vector<8x4xf32>
    %230 = arith.mulf %223, %193 : vector<8x4xf32>
    %231 = arith.mulf %218, %224 : vector<8x4xf32>
    %232 = arith.addf %230, %231 : vector<8x4xf32>
    %233 = math.tanh %232 : vector<8x4xf32>
    %234 = arith.mulf %229, %233 : vector<8x4xf32>
    %235 = vector.extract_strided_slice %11 {offsets = [48, 0], sizes = [8, 16], strides = [1, 1]} : vector<64x32xf32> to vector<8x16xf32>
    %236 = vector.extract_strided_slice %234 {offsets = [0, 0], sizes = [8, 1], strides = [1, 1]} : vector<8x4xf32> to vector<8x1xf32>
    %237 = vector.broadcast %236 : vector<8x1xf32> to vector<8x16xf32>
    %238 = arith.mulf %237, %14 : vector<8x16xf32>
    %239 = vector.extract_strided_slice %234 {offsets = [0, 1], sizes = [8, 1], strides = [1, 1]} : vector<8x4xf32> to vector<8x1xf32>
    %240 = vector.broadcast %239 : vector<8x1xf32> to vector<8x16xf32>
    %241 = arith.mulf %240, %17 : vector<8x16xf32>
    %242 = arith.addf %238, %241 : vector<8x16xf32>
    %243 = vector.extract_strided_slice %234 {offsets = [0, 2], sizes = [8, 1], strides = [1, 1]} : vector<8x4xf32> to vector<8x1xf32>
    %244 = vector.broadcast %243 : vector<8x1xf32> to vector<8x16xf32>
    %245 = arith.mulf %244, %20 : vector<8x16xf32>
    %246 = vector.extract_strided_slice %234 {offsets = [0, 3], sizes = [8, 1], strides = [1, 1]} : vector<8x4xf32> to vector<8x1xf32>
    %247 = vector.broadcast %246 : vector<8x1xf32> to vector<8x16xf32>
    %248 = arith.mulf %247, %23 : vector<8x16xf32>
    %249 = arith.addf %245, %248 : vector<8x16xf32>
    %250 = arith.addf %242, %249 : vector<8x16xf32>
    %251 = arith.addf %235, %250 : vector<8x16xf32>
    %252 = math.tanh %251 : vector<8x16xf32>
    %253 = vector.extract_strided_slice %252 {offsets = [0, 0], sizes = [8, 4], strides = [1, 1]} : vector<8x16xf32> to vector<8x4xf32>
    %cst_38 = arith.constant 5.000000e-01 : f32
    %254 = vector.broadcast %cst_38 : f32 to vector<8x4xf32>
    %255 = arith.mulf %254, %253 : vector<8x4xf32>
    %cst_39 = arith.constant 5.000000e-01 : f32
    %256 = vector.broadcast %cst_39 : f32 to vector<8x4xf32>
    %257 = arith.addf %255, %256 : vector<8x4xf32>
    %258 = vector.extract_strided_slice %252 {offsets = [0, 4], sizes = [8, 4], strides = [1, 1]} : vector<8x16xf32> to vector<8x4xf32>
    %cst_40 = arith.constant 5.000000e-01 : f32
    %259 = vector.broadcast %cst_40 : f32 to vector<8x4xf32>
    %260 = arith.mulf %259, %258 : vector<8x4xf32>
    %cst_41 = arith.constant 5.000000e-01 : f32
    %261 = vector.broadcast %cst_41 : f32 to vector<8x4xf32>
    %262 = arith.addf %260, %261 : vector<8x4xf32>
    %263 = vector.extract_strided_slice %252 {offsets = [0, 8], sizes = [8, 4], strides = [1, 1]} : vector<8x16xf32> to vector<8x4xf32>
    %264 = vector.extract_strided_slice %252 {offsets = [0, 12], sizes = [8, 4], strides = [1, 1]} : vector<8x16xf32> to vector<8x4xf32>
    %cst_42 = arith.constant 5.000000e-01 : f32
    %265 = vector.broadcast %cst_42 : f32 to vector<8x4xf32>
    %266 = arith.mulf %265, %264 : vector<8x4xf32>
    %cst_43 = arith.constant 5.000000e-01 : f32
    %267 = vector.broadcast %cst_43 : f32 to vector<8x4xf32>
    %268 = arith.addf %266, %267 : vector<8x4xf32>
    %269 = arith.mulf %262, %232 : vector<8x4xf32>
    %270 = arith.mulf %257, %263 : vector<8x4xf32>
    %271 = arith.addf %269, %270 : vector<8x4xf32>
    %272 = math.tanh %271 : vector<8x4xf32>
    %273 = arith.mulf %268, %272 : vector<8x4xf32>
    %274 = vector.extract_strided_slice %11 {offsets = [56, 0], sizes = [8, 16], strides = [1, 1]} : vector<64x32xf32> to vector<8x16xf32>
    %275 = vector.extract_strided_slice %273 {offsets = [0, 0], sizes = [8, 1], strides = [1, 1]} : vector<8x4xf32> to vector<8x1xf32>
    %276 = vector.broadcast %275 : vector<8x1xf32> to vector<8x16xf32>
    %277 = arith.mulf %276, %14 : vector<8x16xf32>
    %278 = vector.extract_strided_slice %273 {offsets = [0, 1], sizes = [8, 1], strides = [1, 1]} : vector<8x4xf32> to vector<8x1xf32>
    %279 = vector.broadcast %278 : vector<8x1xf32> to vector<8x16xf32>
    %280 = arith.mulf %279, %17 : vector<8x16xf32>
    %281 = arith.addf %277, %280 : vector<8x16xf32>
    %282 = vector.extract_strided_slice %273 {offsets = [0, 2], sizes = [8, 1], strides = [1, 1]} : vector<8x4xf32> to vector<8x1xf32>
    %283 = vector.broadcast %282 : vector<8x1xf32> to vector<8x16xf32>
    %284 = arith.mulf %283, %20 : vector<8x16xf32>
    %285 = vector.extract_strided_slice %273 {offsets = [0, 3], sizes = [8, 1], strides = [1, 1]} : vector<8x4xf32> to vector<8x1xf32>
    %286 = vector.broadcast %285 : vector<8x1xf32> to vector<8x16xf32>
    %287 = arith.mulf %286, %23 : vector<8x16xf32>
    %288 = arith.addf %284, %287 : vector<8x16xf32>
    %289 = arith.addf %281, %288 : vector<8x16xf32>
    %290 = arith.addf %274, %289 : vector<8x16xf32>
    %291 = math.tanh %290 : vector<8x16xf32>
    %292 = vector.extract_strided_slice %291 {offsets = [0, 0], sizes = [8, 4], strides = [1, 1]} : vector<8x16xf32> to vector<8x4xf32>
    %cst_44 = arith.constant 5.000000e-01 : f32
    %293 = vector.broadcast %cst_44 : f32 to vector<8x4xf32>
    %294 = arith.mulf %293, %292 : vector<8x4xf32>
    %cst_45 = arith.constant 5.000000e-01 : f32
    %295 = vector.broadcast %cst_45 : f32 to vector<8x4xf32>
    %296 = arith.addf %294, %295 : vector<8x4xf32>
    %297 = vector.extract_strided_slice %291 {offsets = [0, 4], sizes = [8, 4], strides = [1, 1]} : vector<8x16xf32> to vector<8x4xf32>
    %cst_46 = arith.constant 5.000000e-01 : f32
    %298 = vector.broadcast %cst_46 : f32 to vector<8x4xf32>
    %299 = arith.mulf %298, %297 : vector<8x4xf32>
    %cst_47 = arith.constant 5.000000e-01 : f32
    %300 = vector.broadcast %cst_47 : f32 to vector<8x4xf32>
    %301 = arith.addf %299, %300 : vector<8x4xf32>
    %302 = vector.extract_strided_slice %291 {offsets = [0, 8], sizes = [8, 4], strides = [1, 1]} : vector<8x16xf32> to vector<8x4xf32>
    %303 = vector.extract_strided_slice %291 {offsets = [0, 12], sizes = [8, 4], strides = [1, 1]} : vector<8x16xf32> to vector<8x4xf32>
    %cst_48 = arith.constant 5.000000e-01 : f32
    %304 = vector.broadcast %cst_48 : f32 to vector<8x4xf32>
    %305 = arith.mulf %304, %303 : vector<8x4xf32>
    %cst_49 = arith.constant 5.000000e-01 : f32
    %306 = vector.broadcast %cst_49 : f32 to vector<8x4xf32>
    %307 = arith.addf %305, %306 : vector<8x4xf32>
    %308 = arith.mulf %301, %271 : vector<8x4xf32>
    %309 = arith.mulf %296, %302 : vector<8x4xf32>
    %310 = arith.addf %308, %309 : vector<8x4xf32>
    %311 = math.tanh %310 : vector<8x4xf32>
    %312 = arith.mulf %307, %311 : vector<8x4xf32>
    %313 = vector.extract_strided_slice %11 {offsets = [56, 16], sizes = [8, 16], strides = [1, 1]} : vector<64x32xf32> to vector<8x16xf32>
    %314 = math.tanh %313 : vector<8x16xf32>
    %315 = vector.extract_strided_slice %314 {offsets = [0, 0], sizes = [8, 4], strides = [1, 1]} : vector<8x16xf32> to vector<8x4xf32>
    %cst_50 = arith.constant 5.000000e-01 : f32
    %316 = vector.broadcast %cst_50 : f32 to vector<8x4xf32>
    %317 = arith.mulf %316, %315 : vector<8x4xf32>
    %cst_51 = arith.constant 5.000000e-01 : f32
    %318 = vector.broadcast %cst_51 : f32 to vector<8x4xf32>
    %319 = arith.addf %317, %318 : vector<8x4xf32>
    %320 = vector.extract_strided_slice %314 {offsets = [0, 8], sizes = [8, 4], strides = [1, 1]} : vector<8x16xf32> to vector<8x4xf32>
    %321 = arith.mulf %319, %320 : vector<8x4xf32>
    %322 = vector.extract_strided_slice %314 {offsets = [0, 12], sizes = [8, 4], strides = [1, 1]} : vector<8x16xf32> to vector<8x4xf32>
    %cst_52 = arith.constant 5.000000e-01 : f32
    %323 = vector.broadcast %cst_52 : f32 to vector<8x4xf32>
    %324 = arith.mulf %323, %322 : vector<8x4xf32>
    %cst_53 = arith.constant 5.000000e-01 : f32
    %325 = vector.broadcast %cst_53 : f32 to vector<8x4xf32>
    %326 = arith.addf %324, %325 : vector<8x4xf32>
    %327 = math.tanh %321 : vector<8x4xf32>
    %328 = arith.mulf %326, %327 : vector<8x4xf32>
    %329 = tpu.concatenate %312, %328 in 1 : vector<8x4xf32>, vector<8x4xf32> -> vector<8x8xf32>
    %cst_54 = arith.constant dense<0.000000e+00> : vector<8x19xf32>
    %330 = tpu.matmul %329, %7, %cst_54 {dimension_numbers = #tpu.dot_dimension_numbers<[1], [0], [0], [1], [0, 0, 1, 1], [], []>} : vector<8x8xf32>, vector<8x19xf32>, vector<8x19xf32> -> vector<8x19xf32>
    %331 = vector.broadcast %8 : vector<1x19xf32> to vector<8x19xf32>
    %332 = arith.addf %330, %331 : vector<8x19xf32>
    %333 = vector.extract_strided_slice %332 {offsets = [0, 0], sizes = [2, 19], strides = [1, 1]} : vector<8x19xf32> to vector<2x19xf32>
    %c0_55 = arith.constant 0 : index
    %c0_56 = arith.constant 0 : index
    %334 = vector.load %arg2[%c0_55, %c0_56] : memref<2x19xf32, #tpu.memory_space<vmem>>, vector<2x19xf32>
    tpu.vector_store %arg2[%c0_55, %c0_56], %333 {strides = array<i32>} : memref<2x19xf32, #tpu.memory_space<vmem>>, vector<2x19xf32>,
    return
  }
}

</mosaic_0001>

<llo_original>
// kernel: lstm_forward.1
$region0: #{lstm_forward.1}
  #allocation0 [shape = 'u32[]', space=smem, size = 0x4, offset = 0x4, fixed_abs, tag = 'smem constant byte address 0x4 - core index']
  #allocation1 [shape = 'u32[72,128]{1,0:T(1,128)}', space=vmem, size = 0x9000, scoped, tag = 'internal scratch']
  %s0 = inlined_call_operand.vmem [shape: f32[64,2], index: 0, kind: input, shape index: {}]
  %s1 = inlined_call_operand.vmem [shape: f32[8,128], index: 1, kind: input, shape index: {}]
  %s2 = inlined_call_operand.hbm [shape: f32[2,19], index: 2, kind: output, shape index: {}]
  %s3 = sld [smem:[#allocation0]]
  $region18: #{lstm_forward.1} parent=0
    _
  %s5 = ssub.s32 1, %s3
  %s6 = scalar_select 0, %s5, %s3
  $region1: #{lstm_forward.1} parent=0
    #allocation2 [shape = 'u8[1024]{0}', space=vmem, size = 0x400, scoped, tag = 'output window, operand 0, single buffered']
    #allocation3 [shape = 's32[1]{0}', space=sflag, size = 0x4, scoped, tag = 'scoped memory for lstm_forward.1']
    %7 = vsyncpa [#allocation3], 0
    // Predicated region
    $region2: #{lstm_forward.1} parent=1 // pred_check
      _
    $region3: #{lstm_forward.1} parent=1 // pred_check_branch
      %9 = sbr.rel (0) target = $region5
    $region4: #{lstm_forward.1} parent=1 // pred_region
      _
    $region5: #{lstm_forward.1} parent=1 // pred_fallthru
      _
    // Predicated region
    $region6: #{lstm_forward.1} parent=1 // pred_check
      _
    $region7: #{lstm_forward.1} parent=1 // pred_check_branch
      %11 = sbr.rel (0) target = $region9
    $region8: #{lstm_forward.1} parent=1 // pred_region
      _
    $region9: #{lstm_forward.1} parent=1 // pred_fallthru
      _
    %v12 = vld [vmem:[%s1] sm:$0xff]
    %v13 = vld [vmem:[%s0] sm:$0xff]
    %v14 = vld [vmem:[%s0 + $0x8] sm:$0xff]
    %v15 = vld [vmem:[%s0 + $0x10] sm:$0xff]
    %v16 = vld [vmem:[%s0 + $0x18] sm:$0xff]
    %v17 = vld [vmem:[%s0 + $0x20] sm:$0xff]
    %v18 = vld [vmem:[%s0 + $0x28] sm:$0xff]
    %v19 = vld [vmem:[%s0 + $0x30] sm:$0xff]
    %v20 = vld [vmem:[%s0 + $0x38] sm:$0xff]
    %v21 = vmax.f32 %v13, 0.0
    %v22 = vmax.f32 %v14, 0.0
    %v23 = vmax.f32 %v15, 0.0
    %v24 = vmax.f32 %v16, 0.0
    %v25 = vmax.f32 %v17, 0.0
    %v26 = vmax.f32 %v18, 0.0
    %v27 = vmax.f32 %v19, 0.0
    %v28 = vmax.f32 %v20, 0.0
    %v29 = vperm.slane %v12, 2
    %vm30 = vcmask 15360
    %v32 = vsel %vm30, %v21, 0
    %v35 = vsel %vm30, %v22, 0
    %v38 = vsel %vm30, %v23, 0
    %v41 = vsel %vm30, %v24, 0
    %v44 = vsel %vm30, %v25, 0
    %v47 = vsel %vm30, %v26, 0
    %v50 = vsel %vm30, %v27, 0
    %v53 = vsel %vm30, %v28, 0
    %vm55 = vcmask 1041408
    %v57 = vsel %vm55, %v12, 0
    %59 = vmatpush.msra.mxu0 0.0
    %60 = vmatpush.msra.mxu0 0.0
    %61 = vmatpush.msra.mxu0 0.0
    %62 = vmatpush.msra.mxu0 0.0
    %63 = vmatpush.msra.mxu0 0.0
    %64 = vmatpush.msra.mxu0 0.0
    %65 = vmatpush.msra.mxu0 0.0
    %66 = vmatpush.msra.mxu0 0.0
    %67 = vmatpush.msra.mxu0 0.0
    %68 = vmatpush.msra.mxu0 0.0
    %69 = vmatpush.msra.mxu0 0.0
    %70 = vmatpush.msra.mxu0 0.0
    %71 = vmatpush.msra.mxu0 0.0
    %72 = vmatpush.msra.mxu0 0.0
    %73 = vmatpush.msra.mxu0 0.0
    %74 = vmatpush.msra.mxu0 %v57
    %75 = vmatmul.f32.gmra.mxu0 %v32
    %v76 = vpop.f32.mrf.mxu0
    %v77 = vadd.f32 %v29, %v76
    %78 = vmatmul.f32.gmra.mxu0 %v35
    %v79 = vpop.f32.mrf.mxu0
    %v80 = vadd.f32 %v29, %v79
    %81 = vmatmul.f32.gmra.mxu0 %v38
    %v82 = vpop.f32.mrf.mxu0
    %v83 = vadd.f32 %v29, %v82
    %84 = vmatmul.f32.gmra.mxu0 %v41
    %v85 = vpop.f32.mrf.mxu0
    %v86 = vadd.f32 %v29, %v85
    %87 = vmatmul.f32.gmra.mxu0 %v44
    %v88 = vpop.f32.mrf.mxu0
    %v89 = vadd.f32 %v29, %v88
    %90 = vmatmul.f32.gmra.mxu0 %v47
    %v91 = vpop.f32.mrf.mxu0
    %v92 = vadd.f32 %v29, %v91
    %93 = vmatmul.f32.gmra.mxu0 %v50
    %v94 = vpop.f32.mrf.mxu0
    %v95 = vadd.f32 %v29, %v94
    %96 = vmatmul.f32.gmra.mxu0 %v53
    %v97 = vpop.f32.mrf.mxu0
    %v98 = vadd.f32 %v29, %v97
    %99 = vdwg.mxu0
    %v100 = vperm.slane %v12, 0
    %v101 = vperm.slane %v12, 1
    %v102 = vperm.slane %v12, 3
    %v103 = vtanh.pop %v77
    %v104 = vmul.f32 %v103, 0.5
    %v105 = vadd.f32 %v104, 0.5
    %107 = vrot.lane.b32.xlu0 %v103, 120
    %v108 = vpop.permute.xlu0 %107
    %v110 = vmul.f32 %v105, %v108
    %v111 = vtanh.pop %v110
    %113 = vrot.lane.b32.xlu0 %v111, 12
    %v114 = vpop.permute.xlu0 %113
    %v116 = vmul.f32 %v105, %v114
    %118 = vset.pattern.permute.xlu0 12
    %119 = vperm.xlu0 %118, %v116
    %v120 = vpop.permute.xlu0 %119
    %v122 = vmul.f32 %v120, %v100
    %123 = vset.pattern.permute.xlu0 13
    %124 = vperm.xlu0 %123, %v116
    %v125 = vpop.permute.xlu0 %124
    %v127 = vmul.f32 %v125, %v101
    %v128 = vadd.f32 %v122, %v127
    %129 = vset.pattern.permute.xlu0 14
    %130 = vperm.xlu0 %129, %v116
    %v131 = vpop.permute.xlu0 %130
    %v133 = vmul.f32 %v131, %v29
    %134 = vset.pattern.permute.xlu0 15
    %135 = vperm.xlu0 %134, %v116
    %v136 = vpop.permute.xlu0 %135
    %v138 = vmul.f32 %v136, %v102
    %v139 = vadd.f32 %v133, %v138
    %v140 = vadd.f32 %v128, %v139
    %142 = vrot.lane.b32.xlu0 %v140, 96
    %v143 = vpop.permute.xlu0 %142
    %v145 = vadd.f32 %v80, %v143
    %v146 = vtanh.pop %v145
    %v147 = vmul.f32 %v146, 0.5
    %v148 = vadd.f32 %v147, 0.5
    %150 = vrot.lane.b32.xlu0 %v110, 4
    %v151 = vpop.permute.xlu0 %150
    %v153 = vmul.f32 %v148, %v151
    %155 = vrot.lane.b32.xlu0 %v146, 120
    %v156 = vpop.permute.xlu0 %155
    %v158 = vmul.f32 %v148, %v156
    %160 = vrot.lane.b32.xlu0 %v158, 4
    %v161 = vpop.permute.xlu0 %160
    %v163 = vadd.f32 %v153, %v161
    %v164 = vtanh.pop %v163
    %166 = vrot.lane.b32.xlu0 %v164, 8
    %v167 = vpop.permute.xlu0 %166
    %v169 = vmul.f32 %v148, %v167
    %171 = vset.pattern.permute.xlu0 12
    %172 = vperm.xlu0 %171, %v169
    %v173 = vpop.permute.xlu0 %172
    %v175 = vmul.f32 %v173, %v100
    %176 = vset.pattern.permute.xlu0 13
    %177 = vperm.xlu0 %176, %v169
    %v178 = vpop.permute.xlu0 %177
    %v180 = vmul.f32 %v178, %v101
    %v181 = vadd.f32 %v175, %v180
    %182 = vset.pattern.permute.xlu0 14
    %183 = vperm.xlu0 %182, %v169
    %v184 = vpop.permute.xlu0 %183
    %v186 = vmul.f32 %v184, %v29
    %187 = vset.pattern.permute.xlu0 15
    %188 = vperm.xlu0 %187, %v169
    %v189 = vpop.permute.xlu0 %188
    %v191 = vmul.f32 %v189, %v102
    %v192 = vadd.f32 %v186, %v191
    %v193 = vadd.f32 %v181, %v192
    %195 = vrot.lane.b32.xlu0 %v193, 96
    %v196 = vpop.permute.xlu0 %195
    %v198 = vadd.f32 %v83, %v196
    %v199 = vtanh.pop %v198
    %v200 = vmul.f32 %v199, 0.5
    %v201 = vadd.f32 %v200, 0.5
    %v202 = vmul.f32 %v201, %v163
    %204 = vrot.lane.b32.xlu0 %v199, 120
    %v205 = vpop.permute.xlu0 %204
    %v207 = vmul.f32 %v201, %v205
    %209 = vrot.lane.b32.xlu0 %v207, 4
    %v210 = vpop.permute.xlu0 %209
    %v212 = vadd.f32 %v202, %v210
    %v213 = vtanh.pop %v212
    %215 = vrot.lane.b32.xlu0 %v213, 8
    %v216 = vpop.permute.xlu0 %215
    %v218 = vmul.f32 %v201, %v216
    %220 = vset.pattern.permute.xlu0 12
    %221 = vperm.xlu0 %220, %v218
    %v222 = vpop.permute.xlu0 %221
    %v224 = vmul.f32 %v222, %v100
    %225 = vset.pattern.permute.xlu0 13
    %226 = vperm.xlu0 %225, %v218
    %v227 = vpop.permute.xlu0 %226
    %v229 = vmul.f32 %v227, %v101
    %v230 = vadd.f32 %v224, %v229
    %231 = vset.pattern.permute.xlu0 14
    %232 = vperm.xlu0 %231, %v218
    %v233 = vpop.permute.xlu0 %232
    %v235 = vmul.f32 %v233, %v29
    %236 = vset.pattern.permute.xlu0 15
    %237 = vperm.xlu0 %236, %v218
    %v238 = vpop.permute.xlu0 %237
    %v240 = vmul.f32 %v238, %v102
    %v241 = vadd.f32 %v235, %v240
    %v242 = vadd.f32 %v230, %v241
    %244 = vrot.lane.b32.xlu0 %v242, 96
    %v245 = vpop.permute.xlu0 %244
    %v247 = vadd.f32 %v86, %v245
    %v248 = vtanh.pop %v247
    %v249 = vmul.f32 %v248, 0.5
    %v250 = vadd.f32 %v249, 0.5
    %v251 = vmul.f32 %v250, %v212
    %253 = vrot.lane.b32.xlu0 %v248, 120
    %v254 = vpop.permute.xlu0 %253
    %v256 = vmul.f32 %v250, %v254
    %258 = vrot.lane.b32.xlu0 %v256, 4
    %v259 = vpop.permute.xlu0 %258
    %v261 = vadd.f32 %v251, %v259
    %v262 = vtanh.pop %v261
    %264 = vrot.lane.b32.xlu0 %v262, 8
    %v265 = vpop.permute.xlu0 %264
    %v267 = vmul.f32 %v250, %v265
    %269 = vset.pattern.permute.xlu0 12
    %270 = vperm.xlu0 %269, %v267
    %v271 = vpop.permute.xlu0 %270
    %v273 = vmul.f32 %v271, %v100
    %274 = vset.pattern.permute.xlu0 13
    %275 = vperm.xlu0 %274, %v267
    %v276 = vpop.permute.xlu0 %275
    %v278 = vmul.f32 %v276, %v101
    %v279 = vadd.f32 %v273, %v278
    %280 = vset.pattern.permute.xlu0 14
    %281 = vperm.xlu0 %280, %v267
    %v282 = vpop.permute.xlu0 %281
    %v284 = vmul.f32 %v282, %v29
    %285 = vset.pattern.permute.xlu0 15
    %286 = vperm.xlu0 %285, %v267
    %v287 = vpop.permute.xlu0 %286
    %v289 = vmul.f32 %v287, %v102
    %v290 = vadd.f32 %v284, %v289
    %v291 = vadd.f32 %v279, %v290
    %293 = vrot.lane.b32.xlu0 %v291, 96
    %v294 = vpop.permute.xlu0 %293
    %v296 = vadd.f32 %v89, %v294
    %v297 = vtanh.pop %v296
    %v298 = vmul.f32 %v297, 0.5
    %v299 = vadd.f32 %v298, 0.5
    %v300 = vmul.f32 %v299, %v261
    %302 = vrot.lane.b32.xlu0 %v297, 120
    %v303 = vpop.permute.xlu0 %302
    %v305 = vmul.f32 %v299, %v303
    %307 = vrot.lane.b32.xlu0 %v305, 4
    %v308 = vpop.permute.xlu0 %307
    %v310 = vadd.f32 %v300, %v308
    %v311 = vtanh.pop %v310
    %313 = vrot.lane.b32.xlu0 %v311, 8
    %v314 = vpop.permute.xlu0 %313
    %v316 = vmul.f32 %v299, %v314
    %318 = vset.pattern.permute.xlu0 12
    %319 = vperm.xlu0 %318, %v316
    %v320 = vpop.permute.xlu0 %319
    %v322 = vmul.f32 %v320, %v100
    %323 = vset.pattern.permute.xlu0 13
    %324 = vperm.xlu0 %323, %v316
    %v325 = vpop.permute.xlu0 %324
    %v327 = vmul.f32 %v325, %v101
    %v328 = vadd.f32 %v322, %v327
    %329 = vset.pattern.permute.xlu0 14
    %330 = vperm.xlu0 %329, %v316
    %v331 = vpop.permute.xlu0 %330
    %v333 = vmul.f32 %v331, %v29
    %334 = vset.pattern.permute.xlu0 15
    %335 = vperm.xlu0 %334, %v316
    %v336 = vpop.permute.xlu0 %335
    %v338 = vmul.f32 %v336, %v102
    %v339 = vadd.f32 %v333, %v338
    %v340 = vadd.f32 %v328, %v339
    %342 = vrot.lane.b32.xlu0 %v340, 96
    %v343 = vpop.permute.xlu0 %342
    %v345 = vadd.f32 %v92, %v343
    %v346 = vtanh.pop %v345
    %v347 = vmul.f32 %v346, 0.5
    %v348 = vadd.f32 %v347, 0.5
    %v349 = vmul.f32 %v348, %v310
    %351 = vrot.lane.b32.xlu0 %v346, 120
    %v352 = vpop.permute.xlu0 %351
    %v354 = vmul.f32 %v348, %v352
    %356 = vrot.lane.b32.xlu0 %v354, 4
    %v357 = vpop.permute.xlu0 %356
    %v359 = vadd.f32 %v349, %v357
    %v360 = vtanh.pop %v359
    %362 = vrot.lane.b32.xlu0 %v360, 8
    %v363 = vpop.permute.xlu0 %362
    %v365 = vmul.f32 %v348, %v363
    %367 = vset.pattern.permute.xlu0 12
    %368 = vperm.xlu0 %367, %v365
    %v369 = vpop.permute.xlu0 %368
    %v371 = vmul.f32 %v369, %v100
    %372 = vset.pattern.permute.xlu0 13
    %373 = vperm.xlu0 %372, %v365
    %v374 = vpop.permute.xlu0 %373
    %v376 = vmul.f32 %v374, %v101
    %v377 = vadd.f32 %v371, %v376
    %378 = vset.pattern.permute.xlu0 14
    %379 = vperm.xlu0 %378, %v365
    %v380 = vpop.permute.xlu0 %379
    %v382 = vmul.f32 %v380, %v29
    %383 = vset.pattern.permute.xlu0 15
    %384 = vperm.xlu0 %383, %v365
    %v385 = vpop.permute.xlu0 %384
    %v387 = vmul.f32 %v385, %v102
    %v388 = vadd.f32 %v382, %v387
    %v389 = vadd.f32 %v377, %v388
    %391 = vrot.lane.b32.xlu0 %v389, 96
    %v392 = vpop.permute.xlu0 %391
    %v394 = vadd.f32 %v95, %v392
    %v395 = vtanh.pop %v394
    %v396 = vmul.f32 %v395, 0.5
    %v397 = vadd.f32 %v396, 0.5
    %v398 = vmul.f32 %v397, %v359
    %400 = vrot.lane.b32.xlu0 %v395, 120
    %v401 = vpop.permute.xlu0 %400
    %v403 = vmul.f32 %v397, %v401
    %405 = vrot.lane.b32.xlu0 %v403, 4
    %v406 = vpop.permute.xlu0 %405
    %v408 = vadd.f32 %v398, %v406
    %v409 = vtanh.pop %v408
    %411 = vrot.lane.b32.xlu0 %v409, 8
    %v412 = vpop.permute.xlu0 %411
    %v414 = vmul.f32 %v397, %v412
    %416 = vset.pattern.permute.xlu0 12
    %417 = vperm.xlu0 %416, %v414
    %v418 = vpop.permute.xlu0 %417
    %v420 = vmul.f32 %v418, %v100
    %421 = vset.pattern.permute.xlu0 13
    %422 = vperm.xlu0 %421, %v414
    %v423 = vpop.permute.xlu0 %422
    %v425 = vmul.f32 %v423, %v101
    %v426 = vadd.f32 %v420, %v425
    %427 = vset.pattern.permute.xlu0 14
    %428 = vperm.xlu0 %427, %v414
    %v429 = vpop.permute.xlu0 %428
    %v431 = vmul.f32 %v429, %v29
    %432 = vset.pattern.permute.xlu0 15
    %433 = vperm.xlu0 %432, %v414
    %v434 = vpop.permute.xlu0 %433
    %v436 = vmul.f32 %v434, %v102
    %v437 = vadd.f32 %v431, %v436
    %v438 = vadd.f32 %v426, %v437
    %440 = vrot.lane.b32.xlu0 %v438, 96
    %v441 = vpop.permute.xlu0 %440
    %v443 = vadd.f32 %v98, %v441
    %v444 = vtanh.pop %v443
    %v445 = vmul.f32 %v444, 0.5
    %v446 = vadd.f32 %v445, 0.5
    %v447 = vmul.f32 %v446, %v408
    %449 = vrot.lane.b32.xlu0 %v444, 120
    %v450 = vpop.permute.xlu0 %449
    %v452 = vmul.f32 %v446, %v450
    %454 = vrot.lane.b32.xlu0 %v452, 4
    %v455 = vpop.permute.xlu0 %454
    %v457 = vadd.f32 %v447, %v455
    %v458 = vtanh.pop %v457
    %460 = vrot.lane.b32.xlu0 %v458, 8
    %v461 = vpop.permute.xlu0 %460
    %v463 = vmul.f32 %v446, %v461
    %v464 = vtanh.pop %v98
    %v465 = vmul.f32 %v464, 0.5
    %v466 = vadd.f32 %v465, 0.5
    %468 = vrot.lane.b32.xlu0 %v464, 120
    %v469 = vpop.permute.xlu0 %468
    %v471 = vmul.f32 %v466, %v469
    %v472 = vtanh.pop %v471
    %474 = vrot.lane.b32.xlu0 %v472, 12
    %v475 = vpop.permute.xlu0 %474
    %v477 = vmul.f32 %v466, %v475
    %479 = vrot.lane.b32.xlu0 %v463, 116
    %v480 = vpop.permute.xlu0 %479
    %483 = vrot.lane.b32.xlu0 %v477, 104
    %v484 = vpop.permute.xlu0 %483
    %vm486 = vcmask 31744
    %v487 = vsel %vm486, %v480, %v484
    %v488 = vperm.slane %v12, 7
    %489 = vrot.lane.b32.xlu0 %v12, 64
    %v490 = vpop.permute.xlu0 %489
    %493 = vrot.lane.b32.xlu0 %v488, 32
    %v494 = vpop.permute.xlu0 %493
    %vm496 = vcmask 64512
    %v498 = vsel %vm496, %v487, 0
    %500 = vmatpush.msra.mxu0 0.0
    %501 = vmatpush.msra.mxu0 0.0
    %502 = vmatpush.msra.mxu0 0.0
    %503 = vmatpush.msra.mxu0 0.0
    %504 = vmatpush.msra.mxu0 0.0
    %505 = vmatpush.msra.mxu0 0.0
    %506 = vmatpush.msra.mxu0 0.0
    %507 = vmatpush.msra.mxu0 0.0
    %508 = vmatpush.msra.mxu0 0.0
    %509 = vmatpush.msra.mxu0 0.0
    %510 = vmatpush.msra.mxu0 0.0
    %511 = vmatpush.msra.mxu0 0.0
    %512 = vmatpush.msra.mxu0 0.0
    %513 = vmatpush.msra.mxu0 0.0
    %514 = vmatpush.msra.mxu0 0.0
    %515 = vmatpush.msra.mxu0 %v490
    %516 = vmatmul.f32.gmra.mxu0 %v498
    %v517 = vpop.f32.mrf.mxu0
    %v518 = vadd.f32 %v494, %v517
    %519 = vdwg.mxu0
    %vm520 = vcmask 148480
    %521 = vst.msk [vmem:[#allocation2] sm:$0x3] %vm520, %v518
    // Predicated region
    $region10: #{lstm_forward.1} parent=1 // pred_check
      _
    $region11: #{lstm_forward.1} parent=1 // pred_check_branch
      %523 = sbr.rel (0) target = $region13
    $region12: #{lstm_forward.1} parent=1 // pred_region
      %525 = vsyncadd [#allocation3], 0
      %s527 = sshll.u32 [#allocation2], 4
      %s528 = int_to_ptr.vmem [resolvable:$true] %s527
      %s529 = sshll.u32 %s2, 4
      %s530 = int_to_ptr.hbm [resolvable:$true] %s529
      %532 = dma.vmem_to_hbm [thread:$0]  %s528, 32, %s530, [#allocation3]
    $region13: #{lstm_forward.1} parent=1 // pred_fallthru
      _
    // Predicated region
    $region14: #{lstm_forward.1} parent=1 // pred_check
      _
    $region15: #{lstm_forward.1} parent=1 // pred_check_branch
      %534 = sbr.rel (0) target = $region17
    $region16: #{lstm_forward.1} parent=1 // pred_region
      %536 = dma.done [#allocation3], 32
    $region17: #{lstm_forward.1} parent=1 // pred_fallthru
      _
    %537 = vsyncpa [#allocation3], 1

</llo_original>
